<compile_context>
chip_gen: v5e
topology: v5e:2x2
jax: 0.10.0
libtpu: 0.0.40
codegen_flags: <defaults>
</compile_context>

<pallas_src>
import jax
import jax.numpy as jnp
from jax.experimental import pallas as pl
from jax.experimental.pallas import tpu as pltpu


def _base_attention_kernel(q_ref, k_ref, v_ref, w_ref, m_ref, o_ref):
    """One fused block: scores -> masked softmax -> context -> concat-Linear-tanh update.

    q_ref: (Bt, H)   k_ref/v_ref: (Bt, T, H)   w_ref: (2H, H) = W_c.weight.T
    m_ref: (Bt, T)   o_ref: (Bt, H)
    """
    H = q_ref.shape[-1]
    q = q_ref[...].astype(jnp.float32)          # (Bt, H)
    k = k_ref[...].astype(jnp.float32)          # (Bt, T, H)
    v = v_ref[...].astype(jnp.float32)          # (Bt, T, H)
    mask = m_ref[...]                           # (Bt, T), nonzero == keep

    # --- attention scores: batched dot product (MXU batched matmul with q-len == 1) ---
    scores = jnp.einsum('bqh,bth->bqt', q[:, None, :], k,
                        preferred_element_type=jnp.float32)[:, 0, :]   # (Bt, T)
    scores = jnp.where(mask != 0, scores, -1e9)

    # --- softmax over keys ---
    s_max = jnp.max(scores, axis=-1, keepdims=True)
    e = jnp.exp(scores - s_max)
    a = e / jnp.sum(e, axis=-1, keepdims=True)                          # (Bt, T)

    # --- context vector: a @ values ---
    c = jnp.einsum('bqt,bth->bqh', a[:, None, :], v,
                   preferred_element_type=jnp.float32)[:, 0, :]         # (Bt, H)

    # --- update: tanh(concat([c, q], -1) @ W).  Split W so the concat never materializes:
    #     [c, q] @ W  ==  c @ W[:H] + q @ W[H:]
    w = w_ref[...].astype(jnp.float32)                                  # (2H, H)
    out = jnp.tanh(
        jnp.dot(c, w[:H, :], preferred_element_type=jnp.float32)
        + jnp.dot(q, w[H:, :], preferred_element_type=jnp.float32))
    o_ref[...] = out.astype(o_ref.dtype)


def _pick_batch_block(B, T, H, itemsize):
    """Multiple-of-8 batch block sized so each keys/values block is ~4 MiB (fits v7x VMEM
    budget with double-buffering; well under v5e/v6e limits)."""
    if B <= 8 or B % 8 != 0:
        return B                                     # full-extent block (always legal)
    target_rows = max(8, (4 << 20) // max(1, T * H * itemsize))
    bt = min(B, (target_rows // 8) * 8)
    bt = max(8, bt)
    while B % bt != 0:                               # keep the grid exact (no ragged tail)
        bt -= 8
    return bt


def base_attention(query_t, keys_bth, values_bth, w_c, keys_mask=None):
    """query_t: (B, H); keys_bth/values_bth: (B, T, H);
    w_c: (H, 2H) — PyTorch nn.Linear(2H, H, bias=False).weight;
    keys_mask: optional (B, T), nonzero == keep. Returns (B, H)."""
    B, H = query_t.shape
    _, T, _ = keys_bth.shape

    w = jnp.transpose(w_c)                           # (2H, H): out = [c, q] @ w
    if keys_mask is None:
        keys_mask = jnp.ones((B, T), dtype=jnp.float32)
    else:
        keys_mask = keys_mask.astype(jnp.float32)

    bt = _pick_batch_block(B, T, H, jnp.dtype(keys_bth.dtype).itemsize)
    grid = (pl.cdiv(B, bt),)

    itemsize = jnp.dtype(query_t.dtype).itemsize
    bytes_accessed = int(
        (query_t.size + keys_bth.size + values_bth.size + B * H) * itemsize
        + w.size * jnp.dtype(w.dtype).itemsize
        + keys_mask.size * 4)

    return pl.pallas_call(
        _base_attention_kernel,
        out_shape=jax.ShapeDtypeStruct((B, H), query_t.dtype),
        grid_spec=pltpu.PrefetchScalarGridSpec(
            num_scalar_prefetch=0,
            grid=grid,
            in_specs=[
                pl.BlockSpec((bt, H), lambda b: (b, 0)),          # query
                pl.BlockSpec((bt, T, H), lambda b: (b, 0, 0)),    # keys
                pl.BlockSpec((bt, T, H), lambda b: (b, 0, 0)),    # values
                pl.BlockSpec((2 * H, H), lambda b: (0, 0)),       # W_c^T (resident)
                pl.BlockSpec((bt, T), lambda b: (b, 0)),          # mask
            ],
            out_specs=pl.BlockSpec((bt, H), lambda b: (b, 0)),
        ),
        compiler_params=pltpu.CompilerParams(
            # batch blocks are independent -> megacore-shardable on v7x
            dimension_semantics=("parallel",),
        ),
        cost_estimate=pl.CostEstimate(
            flops=int(4 * B * T * H + 4 * B * H * H),
            transcendentals=int(B * T + B * H),
            bytes_accessed=bytes_accessed,
        ),
    )(query_t, keys_bth, values_bth, w, keys_mask)


if __name__ == "__main__":
    key = jax.random.PRNGKey(0)
    B, T, H = 2, 8, 32
    kq, kk, kv, kw = jax.random.split(key, 4)

    q = jax.random.normal(kq, (B, H), dtype=jnp.float32)
    keys = jax.random.normal(kk, (B, T, H), dtype=jnp.float32)
    values = jax.random.normal(kv, (B, T, H), dtype=jnp.float32)
    # PyTorch nn.Linear(2H, H, bias=False).weight has shape (H, 2H)
    w_c = jax.random.normal(kw, (H, 2 * H), dtype=jnp.float32) / jnp.sqrt(2.0 * H)

    # --- unmasked path ---
    out = base_attention(q, keys, values, w_c)
    out = jax.block_until_ready(out)

    scores = jnp.einsum('bh,bth->bt', q, keys)
    a = jax.nn.softmax(scores, axis=-1)
    c = jnp.einsum('bt,bth->bh', a, values)
    ref = jnp.tanh(jnp.concatenate([c, q], axis=-1) @ w_c.T)
    assert out.shape == (B, H)
    assert jnp.allclose(out, ref, atol=1e-5, rtol=1e-5), float(jnp.max(jnp.abs(out - ref)))

    # --- masked path (second batch row only attends to the first T//2 keys) ---
    mask = (jnp.arange(T)[None, :] < jnp.array([T, T // 2])[:, None]).astype(jnp.float32)
    out_m = jax.block_until_ready(base_attention(q, keys, values, w_c, keys_mask=mask))

    scores_m = jnp.where(mask != 0, scores, -1e9)
    a_m = jax.nn.softmax(scores_m, axis=-1)
    c_m = jnp.einsum('bt,bth->bh', a_m, values)
    ref_m = jnp.tanh(jnp.concatenate([c_m, q], axis=-1) @ w_c.T)
    assert jnp.allclose(out_m, ref_m, atol=1e-5, rtol=1e-5), float(jnp.max(jnp.abs(out_m - ref_m)))

    print("KERNEL_OK")
</pallas_src>

<mosaic_0001>
module attributes {stable_mosaic.version = 11 : i64} {
  func.func @_base_attention_kernel(%arg0: i32, %arg1: memref<2x32xf32, #tpu.memory_space<vmem>>, %arg2: memref<2x8x32xf32, #tpu.memory_space<vmem>>, %arg3: memref<2x8x32xf32, #tpu.memory_space<vmem>>, %arg4: memref<64x32xf32, #tpu.memory_space<vmem>>, %arg5: memref<2x8xf32, #tpu.memory_space<vmem>>, %arg6: memref<2x32xf32, #tpu.memory_space<vmem>>) attributes {dimension_semantics = [#tpu.dimension_semantics<parallel>], iteration_bounds = array<i64: 1>, scalar_prefetch = 0 : i64, scratch_operands = 0 : i64, tpu.core_type = #tpu.core_type<tc>, window_params = [{transform_indices = @transform_0, window_bounds = array<i64: 2, 32>}, {transform_indices = @transform_1, window_bounds = array<i64: 2, 8, 32>}, {transform_indices = @transform_2, window_bounds = array<i64: 2, 8, 32>}, {pipeline_mode = #tpu.pipeline_mode<synchronous>, transform_indices = @transform_3, window_bounds = array<i64: 64, 32>}, {transform_indices = @transform_4, window_bounds = array<i64: 2, 8>}, {transform_indices = @transform_5, window_bounds = array<i64: 2, 32>}]} {
    %c0 = arith.constant 0 : index
    %c0_0 = arith.constant 0 : index
    %0 = vector.load %arg1[%c0, %c0_0] : memref<2x32xf32, #tpu.memory_space<vmem>>, vector<2x32xf32>
    %c0_1 = arith.constant 0 : index
    %c0_2 = arith.constant 0 : index
    %c0_3 = arith.constant 0 : index
    %1 = vector.load %arg2[%c0_1, %c0_2, %c0_3] : memref<2x8x32xf32, #tpu.memory_space<vmem>>, vector<2x8x32xf32>
    %c0_4 = arith.constant 0 : index
    %c0_5 = arith.constant 0 : index
    %c0_6 = arith.constant 0 : index
    %2 = vector.load %arg3[%c0_4, %c0_5, %c0_6] : memref<2x8x32xf32, #tpu.memory_space<vmem>>, vector<2x8x32xf32>
    %c0_7 = arith.constant 0 : index
    %c0_8 = arith.constant 0 : index
    %3 = vector.load %arg5[%c0_7, %c0_8] : memref<2x8xf32, #tpu.memory_space<vmem>>, vector<2x8xf32>
    %4 = vector.shape_cast %0 : vector<2x32xf32> to vector<2x1x32xf32>
    "tpu.trace_start"() <{level = 10 : i32, message = "bqh,bth->bqt"}> : () -> ()
    %cst = arith.constant dense<0.000000e+00> : vector<2x1x8xf32>
    %5 = tpu.matmul %4, %1, %cst {dimension_numbers = #tpu.dot_dimension_numbers<[2], [2], [1], [1], [0, 0, 0, 1, 1, 1], [0], [0]>} : vector<2x1x32xf32>, vector<2x8x32xf32>, vector<2x1x8xf32> -> vector<2x1x8xf32>
    "tpu.trace_stop"() : () -> ()
    %6 = vector.shape_cast %5 : vector<2x1x8xf32> to vector<2x8xf32>
    %cst_9 = arith.constant 0.000000e+00 : f32
    %7 = vector.broadcast %cst_9 : f32 to vector<2x8xf32>
    %8 = arith.cmpf one, %3, %7 : vector<2x8xf32>
    %cst_10 = arith.constant -1.000000e+09 : f32
    %9 = vector.broadcast %cst_10 : f32 to vector<2x8xf32>
    %10 = arith.select %8, %6, %9 : vector<2x8xi1>, vector<2x8xf32>
    %cst_11 = arith.constant dense<0xFF800000> : vector<2xf32>
    %11 = vector.multi_reduction <maximumf>, %10, %cst_11 [1] : vector<2x8xf32> to vector<2xf32>
    %12 = vector.shape_cast %11 : vector<2xf32> to vector<2x1xf32>
    %13 = vector.broadcast %12 : vector<2x1xf32> to vector<2x8xf32>
    %14 = arith.subf %10, %13 : vector<2x8xf32>
    %15 = math.exp %14 : vector<2x8xf32>
    %cst_12 = arith.constant dense<0.000000e+00> : vector<2xf32>
    %16 = vector.multi_reduction <add>, %15, %cst_12 [1] : vector<2x8xf32> to vector<2xf32>
    %17 = vector.shape_cast %16 : vector<2xf32> to vector<2x1xf32>
    %18 = vector.broadcast %17 : vector<2x1xf32> to vector<2x8xf32>
    %19 = arith.divf %15, %18 : vector<2x8xf32>
    %20 = vector.shape_cast %19 : vector<2x8xf32> to vector<2x1x8xf32>
    "tpu.trace_start"() <{level = 10 : i32, message = "bqt,bth->bqh"}> : () -> ()
    %cst_13 = arith.constant dense<0.000000e+00> : vector<2x1x32xf32>
    %21 = tpu.matmul %20, %2, %cst_13 {dimension_numbers = #tpu.dot_dimension_numbers<[2], [1], [1], [2], [0, 0, 0, 1, 1, 2], [0], [0]>} : vector<2x1x8xf32>, vector<2x8x32xf32>, vector<2x1x32xf32> -> vector<2x1x32xf32>
    "tpu.trace_stop"() : () -> ()
    %22 = vector.shape_cast %21 : vector<2x1x32xf32> to vector<2x32xf32>
    %c0_14 = arith.constant 0 : index
    %c0_15 = arith.constant 0 : index
    %23 = vector.load %arg4[%c0_14, %c0_15] : memref<64x32xf32, #tpu.memory_space<vmem>>, vector<64x32xf32>
    %24 = vector.extract_strided_slice %23 {offsets = [0, 0], sizes = [32, 32], strides = [1, 1]} : vector<64x32xf32> to vector<32x32xf32>
    %cst_16 = arith.constant dense<0.000000e+00> : vector<2x32xf32>
    %25 = tpu.matmul %22, %24, %cst_16 {dimension_numbers = #tpu.dot_dimension_numbers<[1], [0], [0], [1], [0, 0, 1, 1], [], []>} : vector<2x32xf32>, vector<32x32xf32>, vector<2x32xf32> -> vector<2x32xf32>
    %26 = vector.extract_strided_slice %23 {offsets = [32, 0], sizes = [32, 32], strides = [1, 1]} : vector<64x32xf32> to vector<32x32xf32>
    %cst_17 = arith.constant dense<0.000000e+00> : vector<2x32xf32>
    %27 = tpu.matmul %0, %26, %cst_17 {dimension_numbers = #tpu.dot_dimension_numbers<[1], [0], [0], [1], [0, 0, 1, 1], [], []>} : vector<2x32xf32>, vector<32x32xf32>, vector<2x32xf32> -> vector<2x32xf32>
    %28 = arith.addf %25, %27 : vector<2x32xf32>
    %29 = math.tanh %28 : vector<2x32xf32>
    %c0_18 = arith.constant 0 : index
    %c0_19 = arith.constant 0 : index
    %30 = vector.load %arg6[%c0_18, %c0_19] : memref<2x32xf32, #tpu.memory_space<vmem>>, vector<2x32xf32>
    tpu.vector_store %arg6[%c0_18, %c0_19], %29 {strides = array<i32>} : memref<2x32xf32, #tpu.memory_space<vmem>>, vector<2x32xf32>,
    return
  }
  func.func @transform_0(%arg0: i32) -> (i32, i32) {
    %c0_i32 = arith.constant 0 : i32
    %c0_i32_0 = arith.constant 0 : i32
    return %arg0, %c0_i32 : i32, i32
  }
  func.func @transform_1(%arg0: i32) -> (i32, i32, i32) {
    %c0_i32 = arith.constant 0 : i32
    %c0_i32_0 = arith.constant 0 : i32
    %c0_i32_1 = arith.constant 0 : i32
    return %arg0, %c0_i32, %c0_i32_0 : i32, i32, i32
  }
  func.func @transform_2(%arg0: i32) -> (i32, i32, i32) {
    %c0_i32 = arith.constant 0 : i32
    %c0_i32_0 = arith.constant 0 : i32
    %c0_i32_1 = arith.constant 0 : i32
    return %arg0, %c0_i32, %c0_i32_0 : i32, i32, i32
  }
  func.func @transform_3(%arg0: i32) -> (i32, i32) {
    %c0_i32 = arith.constant 0 : i32
    %c0_i32_0 = arith.constant 0 : i32
    %c0_i32_1 = arith.constant 0 : i32
    return %c0_i32, %c0_i32_0 : i32, i32
  }
  func.func @transform_4(%arg0: i32) -> (i32, i32) {
    %c0_i32 = arith.constant 0 : i32
    %c0_i32_0 = arith.constant 0 : i32
    return %arg0, %c0_i32 : i32, i32
  }
  func.func @transform_5(%arg0: i32) -> (i32, i32) {
    %c0_i32 = arith.constant 0 : i32
    %c0_i32_0 = arith.constant 0 : i32
    return %arg0, %c0_i32 : i32, i32
  }
}

</mosaic_0001>

<llo_original>
// kernel: tpu_custom_call.1
$region0: #{tpu_custom_call.1}
  #allocation0 [shape = 'u32[]', space=smem, size = 0x4, offset = 0x4, fixed_abs, tag = 'smem constant byte address 0x4 - core index']
  #allocation1 [shape = 'u32[72,128]{1,0:T(1,128)}', space=vmem, size = 0x9000, scoped, tag = 'internal scratch']
  %s0 = inlined_call_operand.vmem [shape: f32[2,32], index: 0, kind: input, shape index: {}]
  %s1 = inlined_call_operand.vmem [shape: f32[2,8,32], index: 1, kind: input, shape index: {}]
  %s2 = inlined_call_operand.vmem [shape: f32[2,8,32], index: 2, kind: input, shape index: {}]
  %s3 = inlined_call_operand.vmem [shape: f32[64,32], index: 3, kind: input, shape index: {}]
  %s4 = inlined_call_operand.vmem [shape: f32[2,8], index: 4, kind: input, shape index: {}]
  %s5 = inlined_call_operand.hbm [shape: f32[2,32], index: 5, kind: output, shape index: {}]
  %s6 = sld [smem:[#allocation0]]
  $region30: #{tpu_custom_call.1} parent=0
    _
  %s8 = ssub.s32 1, %s6
  %s9 = scalar_select 0, %s8, %s6
  $region1: #{tpu_custom_call.1} parent=0
    #allocation2 [shape = 'u8[1024]{0}', space=vmem, size = 0x400, scoped, tag = 'output window, operand 0, single buffered']
    #allocation3 [shape = 's32[1]{0}', space=sflag, size = 0x4, scoped, tag = 'scoped memory for tpu_custom_call.1']
    %10 = vsyncpa [#allocation3], 0
    // Predicated region
    $region2: #{tpu_custom_call.1} parent=1 // pred_check
      _
    $region3: #{tpu_custom_call.1} parent=1 // pred_check_branch
      %12 = sbr.rel (0) target = $region5
    $region4: #{tpu_custom_call.1} parent=1 // pred_region
      _
    $region5: #{tpu_custom_call.1} parent=1 // pred_fallthru
      _
    // Predicated region
    $region6: #{tpu_custom_call.1} parent=1 // pred_check
      _
    $region7: #{tpu_custom_call.1} parent=1 // pred_check_branch
      %14 = sbr.rel (0) target = $region9
    $region8: #{tpu_custom_call.1} parent=1 // pred_region
      _
    $region9: #{tpu_custom_call.1} parent=1 // pred_fallthru
      _
    // Predicated region
    $region10: #{tpu_custom_call.1} parent=1 // pred_check
      _
    $region11: #{tpu_custom_call.1} parent=1 // pred_check_branch
      %16 = sbr.rel (0) target = $region13
    $region12: #{tpu_custom_call.1} parent=1 // pred_region
      _
    $region13: #{tpu_custom_call.1} parent=1 // pred_fallthru
      _
    // Predicated region
    $region14: #{tpu_custom_call.1} parent=1 // pred_check
      _
    $region15: #{tpu_custom_call.1} parent=1 // pred_check_branch
      %18 = sbr.rel (0) target = $region17
    $region16: #{tpu_custom_call.1} parent=1 // pred_region
      _
    $region17: #{tpu_custom_call.1} parent=1 // pred_fallthru
      _
    // Predicated region
    $region18: #{tpu_custom_call.1} parent=1 // pred_check
      _
    $region19: #{tpu_custom_call.1} parent=1 // pred_check_branch
      %20 = sbr.rel (0) target = $region21
    $region20: #{tpu_custom_call.1} parent=1 // pred_region
      _
    $region21: #{tpu_custom_call.1} parent=1 // pred_fallthru
      _
    %v21 = vld [vmem:[%s0] sm:$0x3]
    %v22 = vld [vmem:[%s1] sm:$0xff]
    %v23 = vld [vmem:[%s1 + $0x8] sm:$0xff]
    %v24 = vld [vmem:[%s2] sm:$0xff]
    %v25 = vld [vmem:[%s2 + $0x8] sm:$0xff]
    %v26 = vld [vmem:[%s4] sm:$0x3]
    %v28 = vrot.slane %v21, 1
    %vm29 = vcmask 261120
    %v30 = vsel %vm29, %v21, 0
    %v33 = vsel %vm29, %v22, 0
    %35 = vmatpush.xpose.msra.mxu0 0.0
    %36 = vmatpush.xpose.msra.mxu0 0.0
    %37 = vmatpush.xpose.msra.mxu0 0.0
    %38 = vmatpush.xpose.msra.mxu0 0.0
    %39 = vmatpush.xpose.msra.mxu0 0.0
    %40 = vmatpush.xpose.msra.mxu0 0.0
    %41 = vmatpush.xpose.msra.mxu0 0.0
    %42 = vmatpush.xpose.msra.mxu0 0.0
    %43 = vmatpush.xpose.msra.mxu0 0.0
    %44 = vmatpush.xpose.msra.mxu0 0.0
    %45 = vmatpush.xpose.msra.mxu0 0.0
    %46 = vmatpush.xpose.msra.mxu0 0.0
    %47 = vmatpush.xpose.msra.mxu0 0.0
    %48 = vmatpush.xpose.msra.mxu0 0.0
    %49 = vmatpush.xpose.msra.mxu0 0.0
    %50 = vmatpush.xpose.msra.mxu0 %v33
    %51 = vmatmul.f32.gmra.mxu0 %v30
    %v52 = vpop.f32.mrf.mxu0
    %v53 = vadd.f32 0.0, %v52
    %54 = vdwg.mxu0
    %v55 = vsel %vm29, %v28, 0
    %v58 = vsel %vm29, %v23, 0
    %60 = vmatpush.xpose.msra.mxu0 0.0
    %61 = vmatpush.xpose.msra.mxu0 0.0
    %62 = vmatpush.xpose.msra.mxu0 0.0
    %63 = vmatpush.xpose.msra.mxu0 0.0
    %64 = vmatpush.xpose.msra.mxu0 0.0
    %65 = vmatpush.xpose.msra.mxu0 0.0
    %66 = vmatpush.xpose.msra.mxu0 0.0
    %67 = vmatpush.xpose.msra.mxu0 0.0
    %68 = vmatpush.xpose.msra.mxu0 0.0
    %69 = vmatpush.xpose.msra.mxu0 0.0
    %70 = vmatpush.xpose.msra.mxu0 0.0
    %71 = vmatpush.xpose.msra.mxu0 0.0
    %72 = vmatpush.xpose.msra.mxu0 0.0
    %73 = vmatpush.xpose.msra.mxu0 0.0
    %74 = vmatpush.xpose.msra.mxu0 0.0
    %75 = vmatpush.xpose.msra.mxu0 %v58
    %76 = vmatmul.f32.gmra.mxu0 %v55
    %v77 = vpop.f32.mrf.mxu0
    %v78 = vadd.f32 0.0, %v77
    %79 = vdwg.mxu0
    %vm80 = vcmp.ne.f32.partialorder %v26, 0.0
    %v83 = vrot.slane %v78, 7
    %vm84 = vcmask 1041409
    %v85 = vsel %vm84, %v83, %v53
    %v87 = vsel %vm80, %v85, -1e+09
    %vm88 = vcmask 58368
    %v89 = vsel %vm88, %v87, -inf
    %90 = vmax.xlane.f32.xlu0 %v89
    %v91 = vpop.xlane.xlu0 %90
    %v92 = vsub.f32 %v87, %v91
    %v93 = vmul.f32 %v92, 1.442695
    %v94 = vpow.pop %v93
    %v95 = vsel %vm88, %v94, 0.0
    %96 = vadd.xlane.f32.xlu0 %v95
    %v97 = vpop.xlane.xlu0 %96
    %v98 = vrcp.pop %v97
    %v99 = vmul.f32 %v97, %v98
    %v100 = vsub.f32 1.0, %v99
    %v101 = vmul.f32 %v98, %v100
    %v102 = vadd.f32 %v98, %v101
    %vm103 = vweird.f32 %v97
    %vm104 = vweird.f32 %v98
    %vm105 = vmor %vm103, %vm104
    %v106 = vsel %vm105, %v98, %v102
    %v107 = vand.u32 2147483647, %v97
    %vm108 = vcmp.eq.f32.partialorder %v107, 8.507059e+37
    %v109 = vand.u32 %v97, 2147483648
    %v110 = vor.u32 1.1754944e-38, %v109
    %v111 = vsel %vm108, %v110, %v106
    %v112 = vmul.f32 %v94, %v111
    %v114 = vrot.slane %v112, 1
    %vm115 = vcmask 64512
    %v116 = vsel %vm115, %v112, 0
    %118 = vmatpush.msra.mxu0 0.0
    %119 = vmatpush.msra.mxu0 0.0
    %120 = vmatpush.msra.mxu0 0.0
    %121 = vmatpush.msra.mxu0 0.0
    %122 = vmatpush.msra.mxu0 0.0
    %123 = vmatpush.msra.mxu0 0.0
    %124 = vmatpush.msra.mxu0 0.0
    %125 = vmatpush.msra.mxu0 0.0
    %126 = vmatpush.msra.mxu0 0.0
    %127 = vmatpush.msra.mxu0 0.0
    %128 = vmatpush.msra.mxu0 0.0
    %129 = vmatpush.msra.mxu0 0.0
    %130 = vmatpush.msra.mxu0 0.0
    %131 = vmatpush.msra.mxu0 0.0
    %132 = vmatpush.msra.mxu0 0.0
    %133 = vmatpush.msra.mxu0 %v24
    %134 = vmatmul.f32.gmra.mxu0 %v116
    %v135 = vpop.f32.mrf.mxu0
    %v136 = vadd.f32 0.0, %v135
    %137 = vdwg.mxu0
    %v138 = vsel %vm115, %v114, 0
    %140 = vmatpush.msra.mxu0 0.0
    %141 = vmatpush.msra.mxu0 0.0
    %142 = vmatpush.msra.mxu0 0.0
    %143 = vmatpush.msra.mxu0 0.0
    %144 = vmatpush.msra.mxu0 0.0
    %145 = vmatpush.msra.mxu0 0.0
    %146 = vmatpush.msra.mxu0 0.0
    %147 = vmatpush.msra.mxu0 0.0
    %148 = vmatpush.msra.mxu0 0.0
    %149 = vmatpush.msra.mxu0 0.0
    %150 = vmatpush.msra.mxu0 0.0
    %151 = vmatpush.msra.mxu0 0.0
    %152 = vmatpush.msra.mxu0 0.0
    %153 = vmatpush.msra.mxu0 0.0
    %154 = vmatpush.msra.mxu0 0.0
    %155 = vmatpush.msra.mxu0 %v25
    %156 = vmatmul.f32.gmra.mxu0 %v138
    %v157 = vpop.f32.mrf.mxu0
    %v158 = vadd.f32 0.0, %v157
    %159 = vdwg.mxu0
    %v160 = vld [vmem:[%s3] sm:$0xff]
    %v161 = vld [vmem:[%s3 + $0x8] sm:$0xff]
    %v162 = vld [vmem:[%s3 + $0x10] sm:$0xff]
    %v163 = vld [vmem:[%s3 + $0x18] sm:$0xff]
    %v164 = vld [vmem:[%s3 + $0x20] sm:$0xff]
    %v165 = vld [vmem:[%s3 + $0x28] sm:$0xff]
    %v166 = vld [vmem:[%s3 + $0x30] sm:$0xff]
    %v167 = vld [vmem:[%s3 + $0x38] sm:$0xff]
    %168 = vmatpush.msra.mxu0 0.0
    %169 = vmatpush.msra.mxu0 0.0
    %170 = vmatpush.msra.mxu0 0.0
    %171 = vmatpush.msra.mxu0 0.0
    %172 = vmatpush.msra.mxu0 0.0
    %173 = vmatpush.msra.mxu0 0.0
    %174 = vmatpush.msra.mxu0 0.0
    %175 = vmatpush.msra.mxu0 0.0
    %176 = vmatpush.msra.mxu0 0.0
    %177 = vmatpush.msra.mxu0 0.0
    %178 = vmatpush.msra.mxu0 0.0
    %179 = vmatpush.msra.mxu0 0.0
    %180 = vmatpush.msra.mxu0 %v167
    %181 = vmatpush.msra.mxu0 %v166
    %182 = vmatpush.msra.mxu0 %v165
    %183 = vmatpush.msra.mxu0 %v164
    %184 = vmatmul.f32.gmra.mxu0 %v30
    %v185 = vpop.f32.mrf.mxu0
    %v186 = vadd.f32 0.0, %v185
    %187 = vdwg.mxu0
    %v190 = vrot.slane %v158, 7
    %v191 = vsel %vm84, %v190, %v136
    %v192 = vsel %vm29, %v191, 0
    %194 = vmatpush.msra.mxu0 0.0
    %195 = vmatpush.msra.mxu0 0.0
    %196 = vmatpush.msra.mxu0 0.0
    %197 = vmatpush.msra.mxu0 0.0
    %198 = vmatpush.msra.mxu0 0.0
    %199 = vmatpush.msra.mxu0 0.0
    %200 = vmatpush.msra.mxu0 0.0
    %201 = vmatpush.msra.mxu0 0.0
    %202 = vmatpush.msra.mxu0 0.0
    %203 = vmatpush.msra.mxu0 0.0
    %204 = vmatpush.msra.mxu0 0.0
    %205 = vmatpush.msra.mxu0 0.0
    %206 = vmatpush.msra.mxu0 %v163
    %207 = vmatpush.msra.mxu0 %v162
    %208 = vmatpush.msra.mxu0 %v161
    %209 = vmatpush.msra.mxu0 %v160
    %210 = vmatmul.f32.gmra.mxu0 %v192
    %v211 = vpop.f32.mrf.mxu0
    %v212 = vadd.f32 %v186, %v211
    %213 = vdwg.mxu0
    %v214 = vtanh.pop %v212
    %vm215 = vcmask 254976
    %216 = vst.msk [vmem:[#allocation2] sm:$0x3] %vm215, %v214
    // Predicated region
    $region22: #{tpu_custom_call.1} parent=1 // pred_check
      _
    $region23: #{tpu_custom_call.1} parent=1 // pred_check_branch
      %218 = sbr.rel (0) target = $region25
    $region24: #{tpu_custom_call.1} parent=1 // pred_region
      %220 = vsyncadd [#allocation3], 0
      %s222 = sshll.u32 [#allocation2], 4
      %s223 = int_to_ptr.vmem [resolvable:$true] %s222
      %s224 = sshll.u32 %s5, 4
      %s225 = int_to_ptr.hbm [resolvable:$true] %s224
      %227 = dma.vmem_to_hbm [thread:$0]  %s223, 32, %s225, [#allocation3]
    $region25: #{tpu_custom_call.1} parent=1 // pred_fallthru
      _
    // Predicated region
    $region26: #{tpu_custom_call.1} parent=1 // pred_check
      _
    $region27: #{tpu_custom_call.1} parent=1 // pred_check_branch
      %229 = sbr.rel (0) target = $region29
    $region28: #{tpu_custom_call.1} parent=1 // pred_region
      %231 = dma.done [#allocation3], 32
    $region29: #{tpu_custom_call.1} parent=1 // pred_fallthru
      _
    %232 = vsyncpa [#allocation3], 1

</llo_original>
